<compile_context>
chip_gen: v5e
topology: v5e:2x2
jax: 0.10.0
libtpu: 0.0.40
codegen_flags: <defaults>
</compile_context>

<pallas_src>
import functools

import jax
import jax.numpy as jnp
from jax.experimental import pallas as pl
from jax.experimental.pallas import tpu as pltpu


def _round_up(x, m):
    return ((x + m - 1) // m) * m


def _pick_tile(n, candidates):
    for c in candidates:
        if n % c == 0:
            return c
    return n


def _tpu_vmem_limit_bytes():
    """Scoped-VMEM budget derived from physical VMEM.

    ~3/4 of physical, capped at 96 MiB: -> ~48 MiB on v7x (64 MiB physical),
    96 MiB on v5e/v6e (128 MiB physical).  Falls back to 48 MiB if the query
    is unavailable."""
    cap = 64 << 20
    try:
        cap = int(pltpu.get_tpu_info().vmem_capacity_bytes)
    except Exception:
        pass
    return int(min(96 << 20, (3 * cap) // 4))


def _num_tensorcores():
    """2 on chips with 2 TensorCores per device (v7x; also v4/v5p megacore), else 1."""
    try:
        kind = jax.devices()[0].device_kind.lower()
        if ("v7" in kind) or ("v5p" in kind) or ("v4" in kind):
            return 2
    except Exception:
        pass
    return 1


def _choose_row_tile(N, num_tc, candidates=(512, 256, 128)):
    """Single-TC chips: biggest tile (fewest grid steps).  2-TC chips: make sure
    the 'parallel' row axis has >= 2 blocks so both TensorCores get work."""
    tm = _pick_tile(N, candidates)
    while num_tc >= 2 and (N // tm) < num_tc and tm % 16 == 0:
        tm //= 2
    return tm


# --------------------- fused layer: relu(adj @ (x @ W) + b) ---------------------

def _fused_layer_kernel(x_ref, w_ref, adj_ref, b_ref, out_ref, *, apply_relu):
    # support = x @ W  (bf16 MXU inputs, f32 acc), then one adj row strip of
    # adj @ support + b (+ReLU).  x / W are VMEM-resident across the row-strip
    # grid, so each layer is a single pallas_call and `support` never touches HBM.
    sup = jnp.dot(x_ref[...], w_ref[...],
                  preferred_element_type=jnp.float32).astype(jnp.bfloat16)
    out = jnp.dot(adj_ref[...], sup, preferred_element_type=jnp.float32) + b_ref[...]
    if apply_relu:
        out = jnp.maximum(out, 0.0)
    out_ref[...] = out.astype(out_ref.dtype)


def _fused_layer_fits(N, F, H, num_row_tiles, vmem_limit):
    tm = N // max(1, num_row_tiles)
    need = (
        2 * N * F * 2        # x (conservatively counted double-buffered)
        + 2 * F * H * 2      # W
        + 2 * tm * N * 2     # adj row strip (double-buffered)
        + 2 * tm * H * 4     # out tile
        + N * H * 6          # support temporaries (f32 + bf16)
        + 2 * H * 4          # bias
    )
    return need <= vmem_limit // 2


def fused_graph_conv(x_bf16, w_bf16, adj_bf16, bias_f32, *, apply_relu, out_dtype,
                     num_row_tiles, vmem_limit):
    N, F = x_bf16.shape
    F2, H = w_bf16.shape
    assert F == F2 and adj_bf16.shape == (N, N)
    if N % num_row_tiles != 0 or (N // num_row_tiles) % 8 != 0:
        num_row_tiles = 1
    tm = N // num_row_tiles
    kernel = functools.partial(_fused_layer_kernel, apply_relu=apply_relu)
    return pl.pallas_call(
        kernel,
        out_shape=jax.ShapeDtypeStruct((N, H), out_dtype),
        grid=(num_row_tiles,),
        in_specs=[
            pl.BlockSpec((N, F), lambda i: (0, 0)),    # x, VMEM-resident
            pl.BlockSpec((F, H), lambda i: (0, 0)),    # W, VMEM-resident
            pl.BlockSpec((tm, N), lambda i: (i, 0)),   # adj row strip
            pl.BlockSpec((1, H), lambda i: (0, 0)),    # bias (broadcast)
        ],
        out_specs=pl.BlockSpec((tm, H), lambda i: (i, 0)),
        compiler_params=pltpu.CompilerParams(
            dimension_semantics=("parallel",),
            vmem_limit_bytes=vmem_limit,
        ),
    )(x_bf16, w_bf16, adj_bf16, bias_f32.reshape(1, H).astype(jnp.float32))


# --------------------- fallback path: support = x @ W (K-tiled) ---------------------

def _xw_kernel(x_ref, w_ref, o_ref, acc_ref):
    k = pl.program_id(1)

    @pl.when(k == 0)
    def _():
        acc_ref[...] = jnp.zeros_like(acc_ref)

    acc_ref[...] += jnp.dot(x_ref[...], w_ref[...],
                            preferred_element_type=jnp.float32)

    @pl.when(k == pl.num_programs(1) - 1)
    def _():
        o_ref[...] = acc_ref[...].astype(o_ref.dtype)


def xw_matmul(x_bf16, w_bf16, *, num_tc, vmem_limit):
    """[N, F] @ [F, H] -> bf16 [N, H], tiled over rows and the F reduction axis."""
    N, F = x_bf16.shape
    F2, H = w_bf16.shape
    assert F == F2
    tm = _choose_row_tile(N, num_tc)
    tkf = _pick_tile(F, (512, 256, 128))
    return pl.pallas_call(
        _xw_kernel,
        out_shape=jax.ShapeDtypeStruct((N, H), jnp.bfloat16),
        grid=(N // tm, F // tkf),                         # reduction axis last
        in_specs=[
            pl.BlockSpec((tm, tkf), lambda i, k: (i, k)),
            pl.BlockSpec((tkf, H), lambda i, k: (k, 0)),
        ],
        out_specs=pl.BlockSpec((tm, H), lambda i, k: (i, 0)),
        scratch_shapes=[pltpu.VMEM((tm, H), jnp.float32)],
        compiler_params=pltpu.CompilerParams(
            dimension_semantics=("parallel", "arbitrary"),
            vmem_limit_bytes=vmem_limit,
        ),
    )(x_bf16, w_bf16)


# ------------------ fallback path: out = adj @ support + b (tiled) ------------------

def _agg_kernel_resident(adj_ref, sup_ref, b_ref, out_ref, acc_ref, *, apply_relu, tk):
    # support is fully VMEM-resident; slice the k-th reduction strip out of it.
    k = pl.program_id(1)

    @pl.when(k == 0)
    def _():
        acc_ref[...] = jnp.zeros_like(acc_ref)

    start = pl.multiple_of(k * tk, tk)
    acc_ref[...] += jnp.dot(adj_ref[...], sup_ref[pl.ds(start, tk), :],
                            preferred_element_type=jnp.float32)

    @pl.when(k == pl.num_programs(1) - 1)
    def _():
        out = acc_ref[...] + b_ref[...]
        if apply_relu:
            out = jnp.maximum(out, 0.0)
        out_ref[...] = out.astype(out_ref.dtype)


def _agg_kernel_streamed(adj_ref, sup_ref, b_ref, out_ref, acc_ref, *, apply_relu):
    k = pl.program_id(1)

    @pl.when(k == 0)
    def _():
        acc_ref[...] = jnp.zeros_like(acc_ref)

    acc_ref[...] += jnp.dot(adj_ref[...], sup_ref[...],
                            preferred_element_type=jnp.float32)

    @pl.when(k == pl.num_programs(1) - 1)
    def _():
        out = acc_ref[...] + b_ref[...]
        if apply_relu:
            out = jnp.maximum(out, 0.0)
        out_ref[...] = out.astype(out_ref.dtype)


def adj_aggregate(adj_bf16, support_bf16, bias_f32, *, apply_relu, out_dtype,
                  num_tc, vmem_limit):
    N, N2 = adj_bf16.shape
    Ns, H = support_bf16.shape
    assert N == N2 == Ns
    tm = _choose_row_tile(N, num_tc)
    tk = _pick_tile(N, (1024, 512, 256, 128))
    n_k = N // tk
    b2d = bias_f32.reshape(1, H).astype(jnp.float32)

    # 3-deep buffering on adj hides exposed DMA between reduction steps
    # (only meaningful when there are >= 3 k-steps).
    adj_spec_kwargs = {}
    if n_k >= 3:
        adj_spec_kwargs["pipeline_mode"] = pl.Buffered(3)
    adj_spec = pl.BlockSpec((tm, tk), lambda i, k: (i, k), **adj_spec_kwargs)

    # Keep `support` fully VMEM-resident when small, so it is NOT re-streamed
    # from HBM once per row strip (the kernel is HBM-bandwidth bound).
    resident = (N * H * 2) <= min(8 << 20, vmem_limit // 4)
    if resident:
        kernel = functools.partial(_agg_kernel_resident, apply_relu=apply_relu, tk=tk)
        sup_spec = pl.BlockSpec((N, H), lambda i, k: (0, 0))
    else:
        kernel = functools.partial(_agg_kernel_streamed, apply_relu=apply_relu)
        sup_spec = pl.BlockSpec((tk, H), lambda i, k: (k, 0))

    return pl.pallas_call(
        kernel,
        out_shape=jax.ShapeDtypeStruct((N, H), out_dtype),
        grid=(N // tm, n_k),                              # reduction axis last
        in_specs=[adj_spec, sup_spec, pl.BlockSpec((1, H), lambda i, k: (0, 0))],
        out_specs=pl.BlockSpec((tm, H), lambda i, k: (i, 0)),
        scratch_shapes=[pltpu.VMEM((tm, H), jnp.float32)],
        compiler_params=pltpu.CompilerParams(
            dimension_semantics=("parallel", "arbitrary"),
            vmem_limit_bytes=vmem_limit,
        ),
    )(adj_bf16, support_bf16, b2d)


# ----------------------------- InnerProductDecoder -----------------------------

def _decoder_kernel(n1_ref, n2_ref, o_ref):
    # inputs are [C_pad, TE]; reduce over classes -> lane-dense (1, TE) output
    o_ref[...] = jnp.sum(n1_ref[...] * n2_ref[...], axis=0, keepdims=True)


def inner_product_decoder_pallas(n1_t, n2_t, *, vmem_limit):
    C, E = n1_t.shape
    te = _pick_tile(E, (1024, 512, 256, 128))
    out = pl.pallas_call(
        _decoder_kernel,
        out_shape=jax.ShapeDtypeStruct((1, E), jnp.float32),
        grid=(E // te,),
        in_specs=[
            pl.BlockSpec((C, te), lambda i: (0, i)),
            pl.BlockSpec((C, te), lambda i: (0, i)),
        ],
        out_specs=pl.BlockSpec((1, te), lambda i: (0, i)),
        compiler_params=pltpu.CompilerParams(
            dimension_semantics=("parallel",),
            vmem_limit_bytes=vmem_limit,
        ),
    )(n1_t, n2_t)
    return out[0]


# ----------------------------- Full GCN forward -----------------------------

def gcn_forward(params, x, adj, n1, n2, node_ids_to_index, *, force_tiled=False):
    N, F = x.shape
    H = params["w1"].shape[1]
    C = params["w2"].shape[1]

    vmem_limit = _tpu_vmem_limit_bytes()
    num_tc = _num_tensorcores()

    # lane/sublane-friendly zero-padding.
    #   * padded adj rows/cols are 0: rows N..N_pad of h equal relu(b1) (bias is
    #     broadcast in the epilogue), but they only ever multiply adj's zero
    #     padded columns, so they never leak into real output rows.
    #   * padded W columns / bias entries are 0: padded feature/class columns
    #     stay 0, so the decoder's sum over padded classes contributes 0.
    #   * padded z rows are never gathered (edge indices are < N).
    N_pad = _round_up(max(N, 8), 128)
    F_pad = _round_up(F, 128)
    H_pad = _round_up(H, 128)
    C_pad = _round_up(C, 128)

    x_p = jnp.zeros((N_pad, F_pad), jnp.bfloat16).at[:N, :F].set(x.astype(jnp.bfloat16))
    adj_p = jnp.zeros((N_pad, N_pad), jnp.bfloat16).at[:N, :N].set(adj.astype(jnp.bfloat16))
    w1_p = jnp.zeros((F_pad, H_pad), jnp.bfloat16).at[:F, :H].set(params["w1"].astype(jnp.bfloat16))
    b1_p = jnp.zeros((H_pad,), jnp.float32).at[:H].set(params["b1"].astype(jnp.float32))
    w2_p = jnp.zeros((H_pad, C_pad), jnp.bfloat16).at[:H, :C].set(params["w2"].astype(jnp.bfloat16))
    b2_p = jnp.zeros((C_pad,), jnp.float32).at[:C].set(params["b2"].astype(jnp.float32))

    use_fused = (not force_tiled
                 and _fused_layer_fits(N_pad, F_pad, H_pad, num_tc, vmem_limit)
                 and _fused_layer_fits(N_pad, H_pad, C_pad, num_tc, vmem_limit))

    # TODO(synk): F.dropout(training=True) path not implemented; module runs in
    #             eval mode where dropout is the identity (matches PyTorch).
    # TODO(synk): sparse-adj block-skip (scalar-prefetched nonzero-block lists
    #             via PrefetchScalarGridSpec) not implemented; adj is dense here.
    if use_fused:
        # one pallas_call per layer (2 total)
        h = fused_graph_conv(x_p, w1_p, adj_p, b1_p, apply_relu=True,
                             out_dtype=jnp.bfloat16, num_row_tiles=num_tc,
                             vmem_limit=vmem_limit)
        z = fused_graph_conv(h, w2_p, adj_p, b2_p, apply_relu=False,
                             out_dtype=jnp.float32, num_row_tiles=num_tc,
                             vmem_limit=vmem_limit)
    else:
        sup1 = xw_matmul(x_p, w1_p, num_tc=num_tc, vmem_limit=vmem_limit)
        h = adj_aggregate(adj_p, sup1, b1_p, apply_relu=True, out_dtype=jnp.bfloat16,
                          num_tc=num_tc, vmem_limit=vmem_limit)
        sup2 = xw_matmul(h, w2_p, num_tc=num_tc, vmem_limit=vmem_limit)
        z = adj_aggregate(adj_p, sup2, b2_p, apply_relu=False, out_dtype=jnp.float32,
                          num_tc=num_tc, vmem_limit=vmem_limit)

    # ---- edge-endpoint gather (glue, plain JAX) ----
    n1_idx = node_ids_to_index[n1]
    n2_idx = node_ids_to_index[n2]
    n1_val = z[n1_idx]
    n2_val = z[n2_idx]

    E = n1.shape[0]
    if E < 512:
        # tiny E: the pad + transpose + kernel launch would cost more than the dot
        return jnp.sum(n1_val * n2_val, axis=1)

    E_pad = _round_up(E, 128)
    # TODO(synk): for very large E, move the endpoint gather into the decoder
    #             kernel via scalar-prefetched indices instead of these transposes.
    n1_t = jnp.zeros((C_pad, E_pad), jnp.float32).at[:, :E].set(n1_val.T)
    n2_t = jnp.zeros((C_pad, E_pad), jnp.float32).at[:, :E].set(n2_val.T)
    return inner_product_decoder_pallas(n1_t, n2_t, vmem_limit=vmem_limit)[:E]


def init_params(key, nfeat, nhid, nclass):
    # pygcn GraphConvolution.reset_parameters: uniform(-1/sqrt(out), 1/sqrt(out))
    k1, k2, k3, k4 = jax.random.split(key, 4)
    s1 = 1.0 / jnp.sqrt(jnp.float32(nhid))
    s2 = 1.0 / jnp.sqrt(jnp.float32(nclass))
    return {
        "w1": jax.random.uniform(k1, (nfeat, nhid), jnp.float32, -s1, s1),
        "b1": jax.random.uniform(k2, (nhid,), jnp.float32, -s1, s1),
        "w2": jax.random.uniform(k3, (nhid, nclass), jnp.float32, -s2, s2),
        "b2": jax.random.uniform(k4, (nclass,), jnp.float32, -s2, s2),
    }


def _reference_forward(params, x, adj, n1, n2, node_ids_to_index):
    """Plain-JAX reference mirroring the kernels' bf16 MXU inputs / f32 accumulation."""
    xb = x.astype(jnp.bfloat16)
    adjb = adj.astype(jnp.bfloat16)
    w1b = params["w1"].astype(jnp.bfloat16)
    w2b = params["w2"].astype(jnp.bfloat16)
    sup1 = jnp.dot(xb, w1b, preferred_element_type=jnp.float32).astype(jnp.bfloat16)
    h = jnp.maximum(
        jnp.dot(adjb, sup1, preferred_element_type=jnp.float32)
        + params["b1"][None, :], 0.0).astype(jnp.bfloat16)
    sup2 = jnp.dot(h, w2b, preferred_element_type=jnp.float32).astype(jnp.bfloat16)
    z = (jnp.dot(adjb, sup2, preferred_element_type=jnp.float32)
         + params["b2"][None, :])
    return jnp.sum(z[node_ids_to_index[n1]] * z[node_ids_to_index[n2]], axis=1)


if __name__ == "__main__":
    key = jax.random.PRNGKey(0)
    N, NFEAT, NHID, NCLASS = 200, 48, 32, 16
    E_SMALL, E_LARGE = 64, 640

    (k_feat, k_adj, k_perm, k_n1, k_n2, k_n1b, k_n2b, k_params) = jax.random.split(key, 8)

    # node features
    x = jax.random.normal(k_feat, (N, NFEAT), jnp.float32)

    # symmetric-ish row-normalized dense adjacency (A + I, row-normalized)
    a = (jax.random.uniform(k_adj, (N, N)) < 0.05).astype(jnp.float32)
    a = jnp.maximum(a, a.T) + jnp.eye(N, dtype=jnp.float32)
    adj = a / jnp.sum(a, axis=1, keepdims=True)

    # node ids are a permutation of 0..N-1; node_ids_to_index maps id -> row index
    node_ids = jax.random.permutation(k_perm, N)
    node_ids_to_index = jnp.zeros((N,), jnp.int32).at[node_ids].set(
        jnp.arange(N, dtype=jnp.int32))

    # edges given as (node_id, node_id) pairs
    n1 = node_ids[jax.random.randint(k_n1, (E_SMALL,), 0, N)]
    n2 = node_ids[jax.random.randint(k_n2, (E_SMALL,), 0, N)]
    n1_big = node_ids[jax.random.randint(k_n1b, (E_LARGE,), 0, N)]
    n2_big = node_ids[jax.random.randint(k_n2b, (E_LARGE,), 0, N)]

    params = init_params(k_params, NFEAT, NHID, NCLASS)

    # 1) fused path (default at this size): one pallas_call per layer
    out_fused = jax.block_until_ready(
        gcn_forward(params, x, adj, n1, n2, node_ids_to_index))
    # 2) large-graph tiled fallback path (exercised explicitly)
    out_tiled = jax.block_until_ready(
        gcn_forward(params, x, adj, n1, n2, node_ids_to_index, force_tiled=True))
    # 3) fused path + Pallas decoder (large edge count)
    out_big = jax.block_until_ready(
        gcn_forward(params, x, adj, n1_big, n2_big, node_ids_to_index))

    ref_small = _reference_forward(params, x, adj, n1, n2, node_ids_to_index)
    ref_big = _reference_forward(params, x, adj, n1_big, n2_big, node_ids_to_index)

    assert out_fused.shape == (E_SMALL,)
    assert out_tiled.shape == (E_SMALL,)
    assert out_big.shape == (E_LARGE,)
    assert jnp.allclose(out_fused, ref_small, atol=2e-2, rtol=2e-2)
    assert jnp.allclose(out_tiled, ref_small, atol=2e-2, rtol=2e-2)
    assert jnp.allclose(out_big, ref_big, atol=2e-2, rtol=2e-2)

    print("KERNEL_OK")
</pallas_src>

<mosaic_0001>
module attributes {stable_mosaic.version = 11 : i64} {
  func.func @_fused_layer_kernel(%arg0: i32, %arg1: memref<256x128xbf16, #tpu.memory_space<vmem>>, %arg2: memref<128x128xbf16, #tpu.memory_space<vmem>>, %arg3: memref<256x256xbf16, #tpu.memory_space<vmem>>, %arg4: memref<1x128xf32, #tpu.memory_space<vmem>>, %arg5: memref<256x128xbf16, #tpu.memory_space<vmem>>) attributes {dimension_semantics = [#tpu.dimension_semantics<parallel>], iteration_bounds = array<i64: 1>, scalar_prefetch = 0 : i64, scratch_operands = 0 : i64, tpu.core_type = #tpu.core_type<tc>, window_params = [{pipeline_mode = #tpu.pipeline_mode<synchronous>, transform_indices = @transform_0, window_bounds = array<i64: 256, 128>}, {pipeline_mode = #tpu.pipeline_mode<synchronous>, transform_indices = @transform_1, window_bounds = array<i64: 128, 128>}, {transform_indices = @transform_2, window_bounds = array<i64: 256, 256>}, {pipeline_mode = #tpu.pipeline_mode<synchronous>, transform_indices = @transform_3, window_bounds = array<i64: 1, 128>}, {transform_indices = @transform_4, window_bounds = array<i64: 256, 128>}]} {
    %c0 = arith.constant 0 : index
    %c0_0 = arith.constant 0 : index
    %0 = vector.load %arg1[%c0, %c0_0] : memref<256x128xbf16, #tpu.memory_space<vmem>>, vector<256x128xbf16>
    %c0_1 = arith.constant 0 : index
    %c0_2 = arith.constant 0 : index
    %1 = vector.load %arg2[%c0_1, %c0_2] : memref<128x128xbf16, #tpu.memory_space<vmem>>, vector<128x128xbf16>
    %cst = arith.constant dense<0.000000e+00> : vector<256x128xf32>
    %2 = tpu.matmul %0, %1, %cst {dimension_numbers = #tpu.dot_dimension_numbers<[1], [0], [0], [1], [0, 0, 1, 1], [], []>} : vector<256x128xbf16>, vector<128x128xbf16>, vector<256x128xf32> -> vector<256x128xf32>
    %3 = arith.truncf %2 : vector<256x128xf32> to vector<256x128xbf16>
    %c0_3 = arith.constant 0 : index
    %c0_4 = arith.constant 0 : index
    %4 = vector.load %arg3[%c0_3, %c0_4] : memref<256x256xbf16, #tpu.memory_space<vmem>>, vector<256x256xbf16>
    %cst_5 = arith.constant dense<0.000000e+00> : vector<256x128xf32>
    %5 = tpu.matmul %4, %3, %cst_5 {dimension_numbers = #tpu.dot_dimension_numbers<[1], [0], [0], [1], [0, 0, 1, 1], [], []>} : vector<256x256xbf16>, vector<256x128xbf16>, vector<256x128xf32> -> vector<256x128xf32>
    %c0_6 = arith.constant 0 : index
    %c0_7 = arith.constant 0 : index
    %6 = vector.load %arg4[%c0_6, %c0_7] : memref<1x128xf32, #tpu.memory_space<vmem>>, vector<1x128xf32>
    %7 = vector.broadcast %6 : vector<1x128xf32> to vector<256x128xf32>
    %8 = arith.addf %5, %7 : vector<256x128xf32>
    %cst_8 = arith.constant 0.000000e+00 : f32
    %9 = vector.broadcast %cst_8 : f32 to vector<256x128xf32>
    %10 = arith.maximumf %8, %9 : vector<256x128xf32>
    %11 = arith.truncf %10 : vector<256x128xf32> to vector<256x128xbf16>
    %c0_9 = arith.constant 0 : index
    %c0_10 = arith.constant 0 : index
    %12 = vector.load %arg5[%c0_9, %c0_10] : memref<256x128xbf16, #tpu.memory_space<vmem>>, vector<256x128xbf16>
    tpu.vector_store %arg5[%c0_9, %c0_10], %11 {strides = array<i32>} : memref<256x128xbf16, #tpu.memory_space<vmem>>, vector<256x128xbf16>,
    return
  }
  func.func @transform_0(%arg0: i32) -> (i32, i32) {
    %c0_i32 = arith.constant 0 : i32
    %c0_i32_0 = arith.constant 0 : i32
    %c0_i32_1 = arith.constant 0 : i32
    return %c0_i32, %c0_i32_0 : i32, i32
  }
  func.func @transform_1(%arg0: i32) -> (i32, i32) {
    %c0_i32 = arith.constant 0 : i32
    %c0_i32_0 = arith.constant 0 : i32
    %c0_i32_1 = arith.constant 0 : i32
    return %c0_i32, %c0_i32_0 : i32, i32
  }
  func.func @transform_2(%arg0: i32) -> (i32, i32) {
    %c0_i32 = arith.constant 0 : i32
    %c0_i32_0 = arith.constant 0 : i32
    return %arg0, %c0_i32 : i32, i32
  }
  func.func @transform_3(%arg0: i32) -> (i32, i32) {
    %c0_i32 = arith.constant 0 : i32
    %c0_i32_0 = arith.constant 0 : i32
    %c0_i32_1 = arith.constant 0 : i32
    return %c0_i32, %c0_i32_0 : i32, i32
  }
  func.func @transform_4(%arg0: i32) -> (i32, i32) {
    %c0_i32 = arith.constant 0 : i32
    %c0_i32_0 = arith.constant 0 : i32
    return %arg0, %c0_i32 : i32, i32
  }
}

</mosaic_0001>

<llo_original>
// kernel: tpu_custom_call.1
$region0: #{tpu_custom_call.1}
  #allocation0 [shape = 'u32[]', space=smem, size = 0x4, offset = 0x4, fixed_abs, tag = 'smem constant byte address 0x4 - core index']
  #allocation1 [shape = 'u32[72,128]{1,0:T(1,128)}', space=vmem, size = 0x9000, scoped, tag = 'internal scratch']
  %s0 = inlined_call_operand.hbm [shape: bf16[256,128], index: 0, kind: input, shape index: {}]
  %s1 = inlined_call_operand.hbm [shape: bf16[128,128], index: 1, kind: input, shape index: {}]
  %s2 = inlined_call_operand.hbm [shape: bf16[256,256], index: 2, kind: input, shape index: {}]
  %s3 = inlined_call_operand.vmem [shape: f32[1,128], index: 3, kind: input, shape index: {}]
  %s4 = inlined_call_operand.hbm [shape: bf16[256,128], index: 4, kind: output, shape index: {}]
  %s5 = sld [smem:[#allocation0]]
  $region38: #{tpu_custom_call.1} parent=0
    _
  %s7 = ssub.s32 1, %s5
  %s8 = scalar_select 0, %s7, %s5
  $region1: #{tpu_custom_call.1} parent=0
    #allocation2 [shape = 'u8[65536]{0}', space=vmem, size = 0x10000, scoped, tag = 'input window, operand 0, single buffered']
    #allocation3 [shape = 's32[1]{0}', space=sflag, size = 0x4, scoped, tag = 'scoped memory for tpu_custom_call.1']
    #allocation4 [shape = 's32[1]{0}', space=sflag, size = 0x4, scoped, tag = 'scoped memory for tpu_custom_call.1']
    #allocation5 [shape = 'u8[32768]{0}', space=vmem, size = 0x8000, scoped, tag = 'input window, operand 1, single buffered']
    #allocation6 [shape = 's32[1]{0}', space=sflag, size = 0x4, scoped, tag = 'scoped memory for tpu_custom_call.1']
    #allocation7 [shape = 'u8[131072]{0}', space=vmem, size = 0x20000, scoped, tag = 'input window, operand 2, single buffered']
    #allocation8 [shape = 'u8[65536]{0}', space=vmem, size = 0x10000, scoped, tag = 'output window, operand 0, single buffered']
    %9 = vsyncpa [#allocation3], 0
    %10 = vsyncpa [#allocation6], 0
    %11 = vsyncpa [#allocation4], 0
    // Predicated region
    $region2: #{tpu_custom_call.1} parent=1 // pred_check
      _
    $region3: #{tpu_custom_call.1} parent=1 // pred_check_branch
      %13 = sbr.rel (0) target = $region5
    $region4: #{tpu_custom_call.1} parent=1 // pred_region
      %15 = vsyncadd [#allocation3], 0
      %s16 = sshll.u32 %s0, 4
      %s17 = int_to_ptr.hbm [resolvable:$true] %s16
      %s18 = sshll.u32 [#allocation2], 4
      %s19 = int_to_ptr.vmem [resolvable:$true] %s18
      %24 = dma.hbm_to_vmem [thread:$0]  %s17, 2048, %s19, [#allocation3], 64, 64, 4
    $region5: #{tpu_custom_call.1} parent=1 // pred_fallthru
      _
    // Predicated region
    $region6: #{tpu_custom_call.1} parent=1 // pred_check
      _
    $region7: #{tpu_custom_call.1} parent=1 // pred_check_branch
      %26 = sbr.rel (0) target = $region9
    $region8: #{tpu_custom_call.1} parent=1 // pred_region
      %28 = vsyncadd [#allocation6], 0
      %s29 = sshll.u32 %s1, 4
      %s30 = int_to_ptr.hbm [resolvable:$true] %s29
      %s31 = sshll.u32 [#allocation5], 4
      %s32 = int_to_ptr.vmem [resolvable:$true] %s31
      %37 = dma.hbm_to_vmem [thread:$0]  %s30, 1024, %s32, [#allocation6], 64, 64, 4
    $region9: #{tpu_custom_call.1} parent=1 // pred_fallthru
      _
    // Predicated region
    $region10: #{tpu_custom_call.1} parent=1 // pred_check
      _
    $region11: #{tpu_custom_call.1} parent=1 // pred_check_branch
      %39 = sbr.rel (0) target = $region13
    $region12: #{tpu_custom_call.1} parent=1 // pred_region
      %41 = vsyncadd [#allocation6], 0
      %s42 = sshll.u32 %s2, 4
      %s43 = int_to_ptr.hbm [resolvable:$true] %s42
      %s44 = sshll.u32 [#allocation7], 4
      %s45 = int_to_ptr.vmem [resolvable:$true] %s44
      %50 = dma.hbm_to_vmem [thread:$0]  %s43, 4096, %s45, [#allocation6], 128, 128, 8
    $region13: #{tpu_custom_call.1} parent=1 // pred_fallthru
      _
    // Predicated region
    $region14: #{tpu_custom_call.1} parent=1 // pred_check
      _
    $region15: #{tpu_custom_call.1} parent=1 // pred_check_branch
      %52 = sbr.rel (0) target = $region17
    $region16: #{tpu_custom_call.1} parent=1 // pred_region
      _
    $region17: #{tpu_custom_call.1} parent=1 // pred_fallthru
      _
    // Predicated region
    $region18: #{tpu_custom_call.1} parent=1 // pred_check
      _
    $region19: #{tpu_custom_call.1} parent=1 // pred_check_branch
      %54 = sbr.rel (0) target = $region21
    $region20: #{tpu_custom_call.1} parent=1 // pred_region
      %56 = dma.done [#allocation3], 2048
    $region21: #{tpu_custom_call.1} parent=1 // pred_fallthru
      _
    // Predicated region
    $region22: #{tpu_custom_call.1} parent=1 // pred_check
      _
    $region23: #{tpu_custom_call.1} parent=1 // pred_check_branch
      %58 = sbr.rel (0) target = $region25
    $region24: #{tpu_custom_call.1} parent=1 // pred_region
      %60 = dma.done [#allocation6], 1024
    $region25: #{tpu_custom_call.1} parent=1 // pred_fallthru
      _
    // Predicated region
    $region26: #{tpu_custom_call.1} parent=1 // pred_check
      _
    $region27: #{tpu_custom_call.1} parent=1 // pred_check_branch
      %62 = sbr.rel (0) target = $region29
    $region28: #{tpu_custom_call.1} parent=1 // pred_region
      %64 = dma.done [#allocation6], 4096
    $region29: #{tpu_custom_call.1} parent=1 // pred_fallthru
      _
    %v65 = vld [vmem:[#allocation2] sm:$0xf]
    %v66 = vld [vmem:[#allocation2 + $0x4] sm:$0xf]
    %v67 = vld [vmem:[#allocation2 + $0x8] sm:$0xf]
    %v68 = vld [vmem:[#allocation2 + $0xc] sm:$0xf]
    %v69 = vld [vmem:[#allocation2 + $0x10] sm:$0xf]
    %v70 = vld [vmem:[#allocation2 + $0x14] sm:$0xf]
    %v71 = vld [vmem:[#allocation2 + $0x18] sm:$0xf]
    %v72 = vld [vmem:[#allocation2 + $0x1c] sm:$0xf]
    %v73 = vld [vmem:[#allocation2 + $0x20] sm:$0xf]
    %v74 = vld [vmem:[#allocation2 + $0x24] sm:$0xf]
    %v75 = vld [vmem:[#allocation2 + $0x28] sm:$0xf]
    %v76 = vld [vmem:[#allocation2 + $0x2c] sm:$0xf]
    %v77 = vld [vmem:[#allocation2 + $0x30] sm:$0xf]
    %v78 = vld [vmem:[#allocation2 + $0x34] sm:$0xf]
    %v79 = vld [vmem:[#allocation2 + $0x38] sm:$0xf]
    %v80 = vld [vmem:[#allocation2 + $0x3c] sm:$0xf]
    %v81 = vld [vmem:[#allocation2 + $0x40] sm:$0xf]
    %v82 = vld [vmem:[#allocation2 + $0x44] sm:$0xf]
    %v83 = vld [vmem:[#allocation2 + $0x48] sm:$0xf]
    %v84 = vld [vmem:[#allocation2 + $0x4c] sm:$0xf]
    %v85 = vld [vmem:[#allocation2 + $0x50] sm:$0xf]
    %v86 = vld [vmem:[#allocation2 + $0x54] sm:$0xf]
    %v87 = vld [vmem:[#allocation2 + $0x58] sm:$0xf]
    %v88 = vld [vmem:[#allocation2 + $0x5c] sm:$0xf]
    %v89 = vld [vmem:[#allocation2 + $0x60] sm:$0xf]
    %v90 = vld [vmem:[#allocation2 + $0x64] sm:$0xf]
    %v91 = vld [vmem:[#allocation2 + $0x68] sm:$0xf]
    %v92 = vld [vmem:[#allocation2 + $0x6c] sm:$0xf]
    %v93 = vld [vmem:[#allocation2 + $0x70] sm:$0xf]
    %v94 = vld [vmem:[#allocation2 + $0x74] sm:$0xf]
    %v95 = vld [vmem:[#allocation2 + $0x78] sm:$0xf]
    %v96 = vld [vmem:[#allocation2 + $0x7c] sm:$0xf]
    %v97 = vld [vmem:[#allocation5] sm:$0xf]
    %v98 = vld [vmem:[#allocation5 + $0x4] sm:$0xf]
    %v99 = vld [vmem:[#allocation5 + $0x8] sm:$0xf]
    %v100 = vld [vmem:[#allocation5 + $0xc] sm:$0xf]
    %v101 = vld [vmem:[#allocation5 + $0x10] sm:$0xf]
    %v102 = vld [vmem:[#allocation5 + $0x14] sm:$0xf]
    %v103 = vld [vmem:[#allocation5 + $0x18] sm:$0xf]
    %v104 = vld [vmem:[#allocation5 + $0x1c] sm:$0xf]
    %v105 = vld [vmem:[#allocation5 + $0x20] sm:$0xf]
    %v106 = vld [vmem:[#allocation5 + $0x24] sm:$0xf]
    %v107 = vld [vmem:[#allocation5 + $0x28] sm:$0xf]
    %v108 = vld [vmem:[#allocation5 + $0x2c] sm:$0xf]
    %v109 = vld [vmem:[#allocation5 + $0x30] sm:$0xf]
    %v110 = vld [vmem:[#allocation5 + $0x34] sm:$0xf]
    %v111 = vld [vmem:[#allocation5 + $0x38] sm:$0xf]
    %v112 = vld [vmem:[#allocation5 + $0x3c] sm:$0xf]
    %v145 = vunpack.c.l.b16 %v65
    %v146 = vunpack.c.l.b16 %v66
    %v147 = vunpack.c.l.b16 %v67
    %v148 = vunpack.c.l.b16 %v68
    %v149 = vunpack.c.l.b16 %v69
    %v150 = vunpack.c.l.b16 %v70
    %v151 = vunpack.c.l.b16 %v71
    %v152 = vunpack.c.l.b16 %v72
    %v153 = vunpack.c.l.b16 %v73
    %v154 = vunpack.c.l.b16 %v74
    %v155 = vunpack.c.l.b16 %v75
    %v156 = vunpack.c.l.b16 %v76
    %v157 = vunpack.c.l.b16 %v77
    %v158 = vunpack.c.l.b16 %v78
    %v159 = vunpack.c.l.b16 %v79
    %v160 = vunpack.c.l.b16 %v80
    %v161 = vunpack.c.l.b16 %v81
    %v162 = vunpack.c.l.b16 %v82
    %v163 = vunpack.c.l.b16 %v83
    %v164 = vunpack.c.l.b16 %v84
    %v165 = vunpack.c.l.b16 %v85
    %v166 = vunpack.c.l.b16 %v86
    %v167 = vunpack.c.l.b16 %v87
    %v168 = vunpack.c.l.b16 %v88
    %v169 = vunpack.c.l.b16 %v89
    %v170 = vunpack.c.l.b16 %v90
    %v171 = vunpack.c.l.b16 %v91
    %v172 = vunpack.c.l.b16 %v92
    %v173 = vunpack.c.l.b16 %v93
    %v174 = vunpack.c.l.b16 %v94
    %v175 = vunpack.c.l.b16 %v95
    %v176 = vunpack.c.l.b16 %v96
    %v177 = vpack.c.b16 %v146, %v145
    %v178 = vpack.c.b16 %v148, %v147
    %v179 = vpack.c.b16 %v150, %v149
    %v180 = vpack.c.b16 %v152, %v151
    %v181 = vpack.c.b16 %v154, %v153
    %v182 = vpack.c.b16 %v156, %v155
    %v183 = vpack.c.b16 %v158, %v157
    %v184 = vpack.c.b16 %v160, %v159
    %v185 = vpack.c.b16 %v162, %v161
    %v186 = vpack.c.b16 %v164, %v163
    %v187 = vpack.c.b16 %v166, %v165
    %v188 = vpack.c.b16 %v168, %v167
    %v189 = vpack.c.b16 %v170, %v169
    %v190 = vpack.c.b16 %v172, %v171
    %v191 = vpack.c.b16 %v174, %v173
    %v192 = vpack.c.b16 %v176, %v175
    %v225 = vunpack.c.l.b16 %v97
    %v226 = vunpack.c.l.b16 %v98
    %v227 = vunpack.c.l.b16 %v99
    %v228 = vunpack.c.l.b16 %v100
    %v229 = vunpack.c.l.b16 %v101
    %v230 = vunpack.c.l.b16 %v102
    %v231 = vunpack.c.l.b16 %v103
    %v232 = vunpack.c.l.b16 %v104
    %v233 = vunpack.c.l.b16 %v105
    %v234 = vunpack.c.l.b16 %v106
    %v235 = vunpack.c.l.b16 %v107
    %v236 = vunpack.c.l.b16 %v108
    %v237 = vunpack.c.l.b16 %v109
    %v238 = vunpack.c.l.b16 %v110
    %v239 = vunpack.c.l.b16 %v111
    %v240 = vunpack.c.l.b16 %v112
    %v241 = vpack.c.b16 %v226, %v225
    %v242 = vpack.c.b16 %v228, %v227
    %v243 = vpack.c.b16 %v230, %v229
    %v244 = vpack.c.b16 %v232, %v231
    %v245 = vpack.c.b16 %v234, %v233
    %v246 = vpack.c.b16 %v236, %v235
    %v247 = vpack.c.b16 %v238, %v237
    %v248 = vpack.c.b16 %v240, %v239
    %257 = vmatpush.bf16.msra.mxu0 %v248
    %258 = vmatpush.bf16.msra.mxu0 %v247
    %259 = vmatpush.bf16.msra.mxu0 %v246
    %260 = vmatpush.bf16.msra.mxu0 %v245
    %261 = vmatpush.bf16.msra.mxu0 %v244
    %262 = vmatpush.bf16.msra.mxu0 %v243
    %263 = vmatpush.bf16.msra.mxu0 %v242
    %264 = vmatpush.bf16.msra.mxu0 %v241
    %265 = vmatmul.bf16.gmra.mxu0 %v177
    %v266 = vpop.f32.mrf.mxu0
    %v267 = vadd.f32 0.0, %v266
    %v268 = vpop.f32.mrf.mxu0
    %v269 = vadd.f32 0.0, %v268
    %270 = vmatmul.bf16.gmra.mxu0 %v178
    %v271 = vpop.f32.mrf.mxu0
    %v272 = vadd.f32 0.0, %v271
    %v273 = vpop.f32.mrf.mxu0
    %v274 = vadd.f32 0.0, %v273
    %275 = vmatmul.bf16.gmra.mxu0 %v179
    %v276 = vpop.f32.mrf.mxu0
    %v277 = vadd.f32 0.0, %v276
    %v278 = vpop.f32.mrf.mxu0
    %v279 = vadd.f32 0.0, %v278
    %280 = vmatmul.bf16.gmra.mxu0 %v180
    %v281 = vpop.f32.mrf.mxu0
    %v282 = vadd.f32 0.0, %v281
    %v283 = vpop.f32.mrf.mxu0
    %v284 = vadd.f32 0.0, %v283
    %285 = vmatmul.bf16.gmra.mxu0 %v181
    %v286 = vpop.f32.mrf.mxu0
    %v287 = vadd.f32 0.0, %v286
    %v288 = vpop.f32.mrf.mxu0
    %v289 = vadd.f32 0.0, %v288
    %290 = vmatmul.bf16.gmra.mxu0 %v182
    %v291 = vpop.f32.mrf.mxu0
    %v292 = vadd.f32 0.0, %v291
    %v293 = vpop.f32.mrf.mxu0
    %v294 = vadd.f32 0.0, %v293
    %295 = vmatmul.bf16.gmra.mxu0 %v183
    %v296 = vpop.f32.mrf.mxu0
    %v297 = vadd.f32 0.0, %v296
    %v298 = vpop.f32.mrf.mxu0
    %v299 = vadd.f32 0.0, %v298
    %300 = vmatmul.bf16.gmra.mxu0 %v184
    %v301 = vpop.f32.mrf.mxu0
    %v302 = vadd.f32 0.0, %v301
    %v303 = vpop.f32.mrf.mxu0
    %v304 = vadd.f32 0.0, %v303
    %305 = vmatmul.bf16.gmra.mxu0 %v185
    %v306 = vpop.f32.mrf.mxu0
    %v307 = vadd.f32 0.0, %v306
    %v308 = vpop.f32.mrf.mxu0
    %v309 = vadd.f32 0.0, %v308
    %310 = vmatmul.bf16.gmra.mxu0 %v186
    %v311 = vpop.f32.mrf.mxu0
    %v312 = vadd.f32 0.0, %v311
    %v313 = vpop.f32.mrf.mxu0
    %v314 = vadd.f32 0.0, %v313
    %315 = vmatmul.bf16.gmra.mxu0 %v187
    %v316 = vpop.f32.mrf.mxu0
    %v317 = vadd.f32 0.0, %v316
    %v318 = vpop.f32.mrf.mxu0
    %v319 = vadd.f32 0.0, %v318
    %320 = vmatmul.bf16.gmra.mxu0 %v188
    %v321 = vpop.f32.mrf.mxu0
    %v322 = vadd.f32 0.0, %v321
    %v323 = vpop.f32.mrf.mxu0
    %v324 = vadd.f32 0.0, %v323
    %325 = vmatmul.bf16.gmra.mxu0 %v189
    %v326 = vpop.f32.mrf.mxu0
    %v327 = vadd.f32 0.0, %v326
    %v328 = vpop.f32.mrf.mxu0
    %v329 = vadd.f32 0.0, %v328
    %330 = vmatmul.bf16.gmra.mxu0 %v190
    %v331 = vpop.f32.mrf.mxu0
    %v332 = vadd.f32 0.0, %v331
    %v333 = vpop.f32.mrf.mxu0
    %v334 = vadd.f32 0.0, %v333
    %335 = vmatmul.bf16.gmra.mxu0 %v191
    %v336 = vpop.f32.mrf.mxu0
    %v337 = vadd.f32 0.0, %v336
    %v338 = vpop.f32.mrf.mxu0
    %v339 = vadd.f32 0.0, %v338
    %340 = vmatmul.bf16.gmra.mxu0 %v192
    %v341 = vpop.f32.mrf.mxu0
    %v342 = vadd.f32 0.0, %v341
    %v343 = vpop.f32.mrf.mxu0
    %v344 = vadd.f32 0.0, %v343
    %345 = vdwg.mxu0
    %v346 = vpack.c.bf16 %v269, %v267
    %v347 = vpack.c.bf16 %v274, %v272
    %v348 = vpack.c.bf16 %v279, %v277
    %v349 = vpack.c.bf16 %v284, %v282
    %v350 = vpack.c.bf16 %v289, %v287
    %v351 = vpack.c.bf16 %v294, %v292
    %v352 = vpack.c.bf16 %v299, %v297
    %v353 = vpack.c.bf16 %v304, %v302
    %v354 = vpack.c.bf16 %v309, %v307
    %v355 = vpack.c.bf16 %v314, %v312
    %v356 = vpack.c.bf16 %v319, %v317
    %v357 = vpack.c.bf16 %v324, %v322
    %v358 = vpack.c.bf16 %v329, %v327
    %v359 = vpack.c.bf16 %v334, %v332
    %v360 = vpack.c.bf16 %v339, %v337
    %v361 = vpack.c.bf16 %v344, %v342
    %v362 = vld [vmem:[#allocation7] sm:$0xff]
    %v363 = vld [vmem:[#allocation7 + $0x8] sm:$0xff]
    %v364 = vld [vmem:[#allocation7 + $0x10] sm:$0xff]
    %v365 = vld [vmem:[#allocation7 + $0x18] sm:$0xff]
    %v366 = vld [vmem:[#allocation7 + $0x20] sm:$0xff]
    %v367 = vld [vmem:[#allocation7 + $0x28] sm:$0xff]
    %v368 = vld [vmem:[#allocation7 + $0x30] sm:$0xff]
    %v369 = vld [vmem:[#allocation7 + $0x38] sm:$0xff]
    %v370 = vld [vmem:[#allocation7 + $0x40] sm:$0xff]
    %v371 = vld [vmem:[#allocation7 + $0x48] sm:$0xff]
    %v372 = vld [vmem:[#allocation7 + $0x50] sm:$0xff]
    %v373 = vld [vmem:[#allocation7 + $0x58] sm:$0xff]
    %v374 = vld [vmem:[#allocation7 + $0x60] sm:$0xff]
    %v375 = vld [vmem:[#allocation7 + $0x68] sm:$0xff]
    %v376 = vld [vmem:[#allocation7 + $0x70] sm:$0xff]
    %v377 = vld [vmem:[#allocation7 + $0x78] sm:$0xff]
    %v378 = vld [vmem:[#allocation7 + $0x80] sm:$0xff]
    %v379 = vld [vmem:[#allocation7 + $0x88] sm:$0xff]
    %v380 = vld [vmem:[#allocation7 + $0x90] sm:$0xff]
    %v381 = vld [vmem:[#allocation7 + $0x98] sm:$0xff]
    %v382 = vld [vmem:[#allocation7 + $0xa0] sm:$0xff]
    %v383 = vld [vmem:[#allocation7 + $0xa8] sm:$0xff]
    %v384 = vld [vmem:[#allocation7 + $0xb0] sm:$0xff]
    %v385 = vld [vmem:[#allocation7 + $0xb8] sm:$0xff]
    %v386 = vld [vmem:[#allocation7 + $0xc0] sm:$0xff]
    %v387 = vld [vmem:[#allocation7 + $0xc8] sm:$0xff]
    %v388 = vld [vmem:[#allocation7 + $0xd0] sm:$0xff]
    %v389 = vld [vmem:[#allocation7 + $0xd8] sm:$0xff]
    %v390 = vld [vmem:[#allocation7 + $0xe0] sm:$0xff]
    %v391 = vld [vmem:[#allocation7 + $0xe8] sm:$0xff]
    %v392 = vld [vmem:[#allocation7 + $0xf0] sm:$0xff]
    %v393 = vld [vmem:[#allocation7 + $0xf8] sm:$0xff]
    %v394 = vld [vmem:[%s3] sm:$0x1]
    %v396 = vperm.slane %v394, 0
    %v430 = vunpack.c.l.b16 %v362
    %v431 = vunpack.c.h.b16 %v362
    %v432 = vunpack.c.l.b16 %v363
    %v433 = vunpack.c.h.b16 %v363
    %v434 = vunpack.c.l.b16 %v364
    %v435 = vunpack.c.h.b16 %v364
    %v436 = vunpack.c.l.b16 %v365
    %v437 = vunpack.c.h.b16 %v365
    %v438 = vunpack.c.l.b16 %v366
    %v439 = vunpack.c.h.b16 %v366
    %v440 = vunpack.c.l.b16 %v367
    %v441 = vunpack.c.h.b16 %v367
    %v442 = vunpack.c.l.b16 %v368
    %v443 = vunpack.c.h.b16 %v368
    %v444 = vunpack.c.l.b16 %v369
    %v445 = vunpack.c.h.b16 %v369
    %v446 = vunpack.c.l.b16 %v370
    %v447 = vunpack.c.h.b16 %v370
    %v448 = vunpack.c.l.b16 %v371
    %v449 = vunpack.c.h.b16 %v371
    %v450 = vunpack.c.l.b16 %v372
    %v451 = vunpack.c.h.b16 %v372
    %v452 = vunpack.c.l.b16 %v373
    %v453 = vunpack.c.h.b16 %v373
    %v454 = vunpack.c.l.b16 %v374
    %v455 = vunpack.c.h.b16 %v374
    %v456 = vunpack.c.l.b16 %v375
    %v457 = vunpack.c.h.b16 %v375
    %v458 = vunpack.c.l.b16 %v376
    %v459 = vunpack.c.h.b16 %v376
    %v460 = vunpack.c.l.b16 %v377
    %v461 = vunpack.c.h.b16 %v377
    %v462 = vunpack.c.l.b16 %v378
    %v463 = vunpack.c.h.b16 %v378
    %v464 = vunpack.c.l.b16 %v379
    %v465 = vunpack.c.h.b16 %v379
    %v466 = vunpack.c.l.b16 %v380
    %v467 = vunpack.c.h.b16 %v380
    %v468 = vunpack.c.l.b16 %v381
    %v469 = vunpack.c.h.b16 %v381
    %v470 = vunpack.c.l.b16 %v382
    %v471 = vunpack.c.h.b16 %v382
    %v472 = vunpack.c.l.b16 %v383
    %v473 = vunpack.c.h.b16 %v383
    %v474 = vunpack.c.l.b16 %v384
    %v475 = vunpack.c.h.b16 %v384
    %v476 = vunpack.c.l.b16 %v385
    %v477 = vunpack.c.h.b16 %v385
    %v478 = vunpack.c.l.b16 %v386
    %v479 = vunpack.c.h.b16 %v386
    %v480 = vunpack.c.l.b16 %v387
    %v481 = vunpack.c.h.b16 %v387
    %v482 = vunpack.c.l.b16 %v388
    %v483 = vunpack.c.h.b16 %v388
    %v484 = vunpack.c.l.b16 %v389
    %v485 = vunpack.c.h.b16 %v389
    %v486 = vunpack.c.l.b16 %v390
    %v487 = vunpack.c.h.b16 %v390
    %v488 = vunpack.c.l.b16 %v391
    %v489 = vunpack.c.h.b16 %v391
    %v490 = vunpack.c.l.b16 %v392
    %v491 = vunpack.c.h.b16 %v392
    %v492 = vunpack.c.l.b16 %v393
    %v493 = vunpack.c.h.b16 %v393
    %v494 = vpack.c.b16 %v432, %v430
    %v495 = vpack.c.b16 %v433, %v431
    %v496 = vpack.c.b16 %v436, %v434
    %v497 = vpack.c.b16 %v437, %v435
    %v498 = vpack.c.b16 %v440, %v438
    %v499 = vpack.c.b16 %v441, %v439
    %v500 = vpack.c.b16 %v444, %v442
    %v501 = vpack.c.b16 %v445, %v443
    %v502 = vpack.c.b16 %v448, %v446
    %v503 = vpack.c.b16 %v449, %v447
    %v504 = vpack.c.b16 %v452, %v450
    %v505 = vpack.c.b16 %v453, %v451
    %v506 = vpack.c.b16 %v456, %v454
    %v507 = vpack.c.b16 %v457, %v455
    %v508 = vpack.c.b16 %v460, %v458
    %v509 = vpack.c.b16 %v461, %v459
    %v510 = vpack.c.b16 %v464, %v462
    %v511 = vpack.c.b16 %v465, %v463
    %v512 = vpack.c.b16 %v468, %v466
    %v513 = vpack.c.b16 %v469, %v467
    %v514 = vpack.c.b16 %v472, %v470
    %v515 = vpack.c.b16 %v473, %v471
    %v516 = vpack.c.b16 %v476, %v474
    %v517 = vpack.c.b16 %v477, %v475
    %v518 = vpack.c.b16 %v480, %v478
    %v519 = vpack.c.b16 %v481, %v479
    %v520 = vpack.c.b16 %v484, %v482
    %v521 = vpack.c.b16 %v485, %v483
    %v522 = vpack.c.b16 %v488, %v486
    %v523 = vpack.c.b16 %v489, %v487
    %v524 = vpack.c.b16 %v492, %v490
    %v525 = vpack.c.b16 %v493, %v491
    %558 = vmatpush.bf16.msra.mxu0 %v353
    %559 = vmatpush.bf16.msra.mxu0 %v352
    %560 = vmatpush.bf16.msra.mxu0 %v351
    %561 = vmatpush.bf16.msra.mxu0 %v350
    %562 = vmatpush.bf16.msra.mxu0 %v349
    %563 = vmatpush.bf16.msra.mxu0 %v348
    %564 = vmatpush.bf16.msra.mxu0 %v347
    %565 = vmatpush.bf16.msra.mxu0 %v346
    %566 = vmatmul.bf16.gmra.mxu0 %v494
    %v567 = vpop.f32.mrf.mxu0
    %v568 = vadd.f32 %v396, %v567
    %v569 = vpop.f32.mrf.mxu0
    %v570 = vadd.f32 %v396, %v569
    %571 = vmatmul.bf16.gmra.mxu0 %v496
    %v572 = vpop.f32.mrf.mxu0
    %v573 = vadd.f32 %v396, %v572
    %v574 = vpop.f32.mrf.mxu0
    %v575 = vadd.f32 %v396, %v574
    %576 = vmatmul.bf16.gmra.mxu0 %v498
    %v577 = vpop.f32.mrf.mxu0
    %v578 = vadd.f32 %v396, %v577
    %v579 = vpop.f32.mrf.mxu0
    %v580 = vadd.f32 %v396, %v579
    %581 = vmatmul.bf16.gmra.mxu0 %v500
    %v582 = vpop.f32.mrf.mxu0
    %v583 = vadd.f32 %v396, %v582
    %v584 = vpop.f32.mrf.mxu0
    %v585 = vadd.f32 %v396, %v584
    %586 = vmatmul.bf16.gmra.mxu0 %v502
    %v587 = vpop.f32.mrf.mxu0
    %v588 = vadd.f32 %v396, %v587
    %v589 = vpop.f32.mrf.mxu0
    %v590 = vadd.f32 %v396, %v589
    %591 = vmatmul.bf16.gmra.mxu0 %v504
    %v592 = vpop.f32.mrf.mxu0
    %v593 = vadd.f32 %v396, %v592
    %v594 = vpop.f32.mrf.mxu0
    %v595 = vadd.f32 %v396, %v594
    %596 = vmatmul.bf16.gmra.mxu0 %v506
    %v597 = vpop.f32.mrf.mxu0
    %v598 = vadd.f32 %v396, %v597
    %v599 = vpop.f32.mrf.mxu0
    %v600 = vadd.f32 %v396, %v599
    %601 = vmatmul.bf16.gmra.mxu0 %v508
    %v602 = vpop.f32.mrf.mxu0
    %v603 = vadd.f32 %v396, %v602
    %v604 = vpop.f32.mrf.mxu0
    %v605 = vadd.f32 %v396, %v604
    %606 = vmatmul.bf16.gmra.mxu0 %v510
    %v607 = vpop.f32.mrf.mxu0
    %v608 = vadd.f32 %v396, %v607
    %v609 = vpop.f32.mrf.mxu0
    %v610 = vadd.f32 %v396, %v609
    %611 = vmatmul.bf16.gmra.mxu0 %v512
    %v612 = vpop.f32.mrf.mxu0
    %v613 = vadd.f32 %v396, %v612
    %v614 = vpop.f32.mrf.mxu0
    %v615 = vadd.f32 %v396, %v614
    %616 = vmatmul.bf16.gmra.mxu0 %v514
    %v617 = vpop.f32.mrf.mxu0
    %v618 = vadd.f32 %v396, %v617
    %v619 = vpop.f32.mrf.mxu0
    %v620 = vadd.f32 %v396, %v619
    %621 = vmatmul.bf16.gmra.mxu0 %v516
    %v622 = vpop.f32.mrf.mxu0
    %v623 = vadd.f32 %v396, %v622
    %v624 = vpop.f32.mrf.mxu0
    %v625 = vadd.f32 %v396, %v624
    %626 = vmatmul.bf16.gmra.mxu0 %v518
    %v627 = vpop.f32.mrf.mxu0
    %v628 = vadd.f32 %v396, %v627
    %v629 = vpop.f32.mrf.mxu0
    %v630 = vadd.f32 %v396, %v629
    %631 = vmatmul.bf16.gmra.mxu0 %v520
    %v632 = vpop.f32.mrf.mxu0
    %v633 = vadd.f32 %v396, %v632
    %v634 = vpop.f32.mrf.mxu0
    %v635 = vadd.f32 %v396, %v634
    %636 = vmatmul.bf16.gmra.mxu0 %v522
    %v637 = vpop.f32.mrf.mxu0
    %v638 = vadd.f32 %v396, %v637
    %v639 = vpop.f32.mrf.mxu0
    %v640 = vadd.f32 %v396, %v639
    %641 = vmatmul.bf16.gmra.mxu0 %v524
    %v642 = vpop.f32.mrf.mxu0
    %v643 = vadd.f32 %v396, %v642
    %v644 = vpop.f32.mrf.mxu0
    %v645 = vadd.f32 %v396, %v644
    %646 = vdwg.mxu0
    %647 = vmatpush.bf16.msra.mxu0 %v361
    %648 = vmatpush.bf16.msra.mxu0 %v360
    %649 = vmatpush.bf16.msra.mxu0 %v359
    %650 = vmatpush.bf16.msra.mxu0 %v358
    %651 = vmatpush.bf16.msra.mxu0 %v357
    %652 = vmatpush.bf16.msra.mxu0 %v356
    %653 = vmatpush.bf16.msra.mxu0 %v355
    %654 = vmatpush.bf16.msra.mxu0 %v354
    %655 = vmatmul.bf16.gmra.mxu0 %v495
    %v656 = vpop.f32.mrf.mxu0
    %v657 = vadd.f32 %v568, %v656
    %v658 = vpop.f32.mrf.mxu0
    %v659 = vadd.f32 %v570, %v658
    %660 = vmatmul.bf16.gmra.mxu0 %v497
    %v661 = vpop.f32.mrf.mxu0
    %v662 = vadd.f32 %v573, %v661
    %v663 = vpop.f32.mrf.mxu0
    %v664 = vadd.f32 %v575, %v663
    %665 = vmatmul.bf16.gmra.mxu0 %v499
    %v666 = vpop.f32.mrf.mxu0
    %v667 = vadd.f32 %v578, %v666
    %v668 = vpop.f32.mrf.mxu0
    %v669 = vadd.f32 %v580, %v668
    %670 = vmatmul.bf16.gmra.mxu0 %v501
    %v671 = vpop.f32.mrf.mxu0
    %v672 = vadd.f32 %v583, %v671
    %v673 = vpop.f32.mrf.mxu0
    %v674 = vadd.f32 %v585, %v673
    %675 = vmatmul.bf16.gmra.mxu0 %v503
    %v676 = vpop.f32.mrf.mxu0
    %v677 = vadd.f32 %v588, %v676
    %v678 = vpop.f32.mrf.mxu0
    %v679 = vadd.f32 %v590, %v678
    %680 = vmatmul.bf16.gmra.mxu0 %v505
    %v681 = vpop.f32.mrf.mxu0
    %v682 = vadd.f32 %v593, %v681
    %v683 = vpop.f32.mrf.mxu0
    %v684 = vadd.f32 %v595, %v683
    %685 = vmatmul.bf16.gmra.mxu0 %v507
    %v686 = vpop.f32.mrf.mxu0
    %v687 = vadd.f32 %v598, %v686
    %v688 = vpop.f32.mrf.mxu0
    %v689 = vadd.f32 %v600, %v688
    %690 = vmatmul.bf16.gmra.mxu0 %v509
    %v691 = vpop.f32.mrf.mxu0
    %v692 = vadd.f32 %v603, %v691
    %v693 = vpop.f32.mrf.mxu0
    %v694 = vadd.f32 %v605, %v693
    %695 = vmatmul.bf16.gmra.mxu0 %v511
    %v696 = vpop.f32.mrf.mxu0
    %v697 = vadd.f32 %v608, %v696
    %v698 = vpop.f32.mrf.mxu0
    %v699 = vadd.f32 %v610, %v698
    %700 = vmatmul.bf16.gmra.mxu0 %v513
    %v701 = vpop.f32.mrf.mxu0
    %v702 = vadd.f32 %v613, %v701
    %v703 = vpop.f32.mrf.mxu0
    %v704 = vadd.f32 %v615, %v703
    %705 = vmatmul.bf16.gmra.mxu0 %v515
    %v706 = vpop.f32.mrf.mxu0
    %v707 = vadd.f32 %v618, %v706
    %v708 = vpop.f32.mrf.mxu0
    %v709 = vadd.f32 %v620, %v708
    %710 = vmatmul.bf16.gmra.mxu0 %v517
    %v711 = vpop.f32.mrf.mxu0
    %v712 = vadd.f32 %v623, %v711
    %v713 = vpop.f32.mrf.mxu0
    %v714 = vadd.f32 %v625, %v713
    %715 = vmatmul.bf16.gmra.mxu0 %v519
    %v716 = vpop.f32.mrf.mxu0
    %v717 = vadd.f32 %v628, %v716
    %v718 = vpop.f32.mrf.mxu0
    %v719 = vadd.f32 %v630, %v718
    %720 = vmatmul.bf16.gmra.mxu0 %v521
    %v721 = vpop.f32.mrf.mxu0
    %v722 = vadd.f32 %v633, %v721
    %v723 = vpop.f32.mrf.mxu0
    %v724 = vadd.f32 %v635, %v723
    %725 = vmatmul.bf16.gmra.mxu0 %v523
    %v726 = vpop.f32.mrf.mxu0
    %v727 = vadd.f32 %v638, %v726
    %v728 = vpop.f32.mrf.mxu0
    %v729 = vadd.f32 %v640, %v728
    %730 = vmatmul.bf16.gmra.mxu0 %v525
    %v731 = vpop.f32.mrf.mxu0
    %v732 = vadd.f32 %v643, %v731
    %v733 = vpop.f32.mrf.mxu0
    %v734 = vadd.f32 %v645, %v733
    %735 = vdwg.mxu0
    %v736 = vmax.f32 %v657, 0.0
    %v737 = vmax.f32 %v659, 0.0
    %v738 = vmax.f32 %v662, 0.0
    %v739 = vmax.f32 %v664, 0.0
    %v740 = vmax.f32 %v667, 0.0
    %v741 = vmax.f32 %v669, 0.0
    %v742 = vmax.f32 %v672, 0.0
    %v743 = vmax.f32 %v674, 0.0
    %v744 = vmax.f32 %v677, 0.0
    %v745 = vmax.f32 %v679, 0.0
    %v746 = vmax.f32 %v682, 0.0
    %v747 = vmax.f32 %v684, 0.0
    %v748 = vmax.f32 %v687, 0.0
    %v749 = vmax.f32 %v689, 0.0
    %v750 = vmax.f32 %v692, 0.0
    %v751 = vmax.f32 %v694, 0.0
    %v752 = vmax.f32 %v697, 0.0
    %v753 = vmax.f32 %v699, 0.0
    %v754 = vmax.f32 %v702, 0.0
    %v755 = vmax.f32 %v704, 0.0
    %v756 = vmax.f32 %v707, 0.0
    %v757 = vmax.f32 %v709, 0.0
    %v758 = vmax.f32 %v712, 0.0
    %v759 = vmax.f32 %v714, 0.0
    %v760 = vmax.f32 %v717, 0.0
    %v761 = vmax.f32 %v719, 0.0
    %v762 = vmax.f32 %v722, 0.0
    %v763 = vmax.f32 %v724, 0.0
    %v764 = vmax.f32 %v727, 0.0
    %v765 = vmax.f32 %v729, 0.0
    %v766 = vmax.f32 %v732, 0.0
    %v767 = vmax.f32 %v734, 0.0
    %v768 = vpack.c.bf16 %v736, %v736
    %v769 = vpack.c.bf16 %v737, %v737
    %v770 = vpack.c.bf16 %v738, %v738
    %v771 = vpack.c.bf16 %v739, %v739
    %v772 = vpack.c.bf16 %v740, %v740
    %v773 = vpack.c.bf16 %v741, %v741
    %v774 = vpack.c.bf16 %v742, %v742
    %v775 = vpack.c.bf16 %v743, %v743
    %v776 = vpack.c.bf16 %v744, %v744
    %v777 = vpack.c.bf16 %v745, %v745
    %v778 = vpack.c.bf16 %v746, %v746
    %v779 = vpack.c.bf16 %v747, %v747
    %v780 = vpack.c.bf16 %v748, %v748
    %v781 = vpack.c.bf16 %v749, %v749
    %v782 = vpack.c.bf16 %v750, %v750
    %v783 = vpack.c.bf16 %v751, %v751
    %v784 = vpack.c.bf16 %v752, %v752
    %v785 = vpack.c.bf16 %v753, %v753
    %v786 = vpack.c.bf16 %v754, %v754
    %v787 = vpack.c.bf16 %v755, %v755
    %v788 = vpack.c.bf16 %v756, %v756
    %v789 = vpack.c.bf16 %v757, %v757
    %v790 = vpack.c.bf16 %v758, %v758
    %v791 = vpack.c.bf16 %v759, %v759
    %v792 = vpack.c.bf16 %v760, %v760
    %v793 = vpack.c.bf16 %v761, %v761
    %v794 = vpack.c.bf16 %v762, %v762
    %v795 = vpack.c.bf16 %v763, %v763
    %v796 = vpack.c.bf16 %v764, %v764
    %v797 = vpack.c.bf16 %v765, %v765
    %v798 = vpack.c.bf16 %v766, %v766
    %v799 = vpack.c.bf16 %v767, %v767
    %800 = vst [vmem:[#allocation8] sm:$0xf] %v768
    %801 = vst [vmem:[#allocation8 + $0x4] sm:$0xf] %v769
    %802 = vst [vmem:[#allocation8 + $0x8] sm:$0xf] %v770
    %803 = vst [vmem:[#allocation8 + $0xc] sm:$0xf] %v771
    %804 = vst [vmem:[#allocation8 + $0x10] sm:$0xf] %v772
    %805 = vst [vmem:[#allocation8 + $0x14] sm:$0xf] %v773
    %806 = vst [vmem:[#allocation8 + $0x18] sm:$0xf] %v774
    %807 = vst [vmem:[#allocation8 + $0x1c] sm:$0xf] %v775
    %808 = vst [vmem:[#allocation8 + $0x20] sm:$0xf] %v776
    %809 = vst [vmem:[#allocation8 + $0x24] sm:$0xf] %v777
    %810 = vst [vmem:[#allocation8 + $0x28] sm:$0xf] %v778
    %811 = vst [vmem:[#allocation8 + $0x2c] sm:$0xf] %v779
    %812 = vst [vmem:[#allocation8 + $0x30] sm:$0xf] %v780
    %813 = vst [vmem:[#allocation8 + $0x34] sm:$0xf] %v781
    %814 = vst [vmem:[#allocation8 + $0x38] sm:$0xf] %v782
    %815 = vst [vmem:[#allocation8 + $0x3c] sm:$0xf] %v783
    %816 = vst [vmem:[#allocation8 + $0x40] sm:$0xf] %v784
    %817 = vst [vmem:[#allocation8 + $0x44] sm:$0xf] %v785
    %818 = vst [vmem:[#allocation8 + $0x48] sm:$0xf] %v786
    %819 = vst [vmem:[#allocation8 + $0x4c] sm:$0xf] %v787
    %820 = vst [vmem:[#allocation8 + $0x50] sm:$0xf] %v788
    %821 = vst [vmem:[#allocation8 + $0x54] sm:$0xf] %v789
    %822 = vst [vmem:[#allocation8 + $0x58] sm:$0xf] %v790
    %823 = vst [vmem:[#allocation8 + $0x5c] sm:$0xf] %v791
    %824 = vst [vmem:[#allocation8 + $0x60] sm:$0xf] %v792
    %825 = vst [vmem:[#allocation8 + $0x64] sm:$0xf] %v793
    %826 = vst [vmem:[#allocation8 + $0x68] sm:$0xf] %v794
    %827 = vst [vmem:[#allocation8 + $0x6c] sm:$0xf] %v795
    %828 = vst [vmem:[#allocation8 + $0x70] sm:$0xf] %v796
    %829 = vst [vmem:[#allocation8 + $0x74] sm:$0xf] %v797
    %830 = vst [vmem:[#allocation8 + $0x78] sm:$0xf] %v798
    %831 = vst [vmem:[#allocation8 + $0x7c] sm:$0xf] %v799
    // Predicated region
    $region30: #{tpu_custom_call.1} parent=1 // pred_check
      _
    $region31: #{tpu_custom_call.1} parent=1 // pred_check_branch
      %833 = sbr.rel (0) target = $region33
    $region32: #{tpu_custom_call.1} parent=1 // pred_region
      %835 = vsyncadd [#allocation4], 0
      %s836 = sshll.u32 [#allocation8], 4
      %s837 = int_to_ptr.vmem [resolvable:$true] %s836
      %s838 = sshll.u32 %s4, 4
      %s839 = int_to_ptr.hbm [resolvable:$true] %s838
      %844 = dma.vmem_to_hbm [thread:$0]  %s837, 2048, %s839, [#allocation4], 64, 64, 4
    $region33: #{tpu_custom_call.1} parent=1 // pred_fallthru
      _
    // Predicated region
    $region34: #{tpu_custom_call.1} parent=1 // pred_check
      _
    $region35: #{tpu_custom_call.1} parent=1 // pred_check_branch
      %846 = sbr.rel (0) target = $region37
    $region36: #{tpu_custom_call.1} parent=1 // pred_region
      %848 = dma.done [#allocation4], 2048
    $region37: #{tpu_custom_call.1} parent=1 // pred_fallthru
      _
    %849 = vsyncpa [#allocation3], 1
    %850 = vsyncpa [#allocation6], 1
    %851 = vsyncpa [#allocation4], 1

</llo_original>
